<compile_context>
chip_gen: v6e
topology: v6e:2x2x1
jax: 0.10.0
libtpu: 0.0.40
codegen_flags: <defaults>
</compile_context>

<pallas_src>
import math

import jax
import jax.numpy as jnp
from jax.experimental import pallas as pl
from jax.experimental.pallas import tpu as pltpu


LANE = 128


def _round_up(x, m):
    return ((x + m - 1) // m) * m


def _device_info():
    """(vmem_capacity_bytes, num_tensorcores) with a safe fallback."""
    try:
        kind = jax.devices()[0].device_kind.lower()
    except Exception:
        kind = ""
    is_v7 = "v7" in kind
    vmem_cap = (64 if is_v7 else 128) * 1024 * 1024
    num_tc = 2 if is_v7 else 1
    return vmem_cap, num_tc


# ---------------------------------------------------------------------------
# Kernels
# ---------------------------------------------------------------------------

def _lora_kernel(x_ref, w_ref, b_ref, a_ref, bs_ref, o_ref):
    # x_ref : (tm, D_in)    input row tile (compute dtype, e.g. bf16)
    # w_ref : (D_in, tn)    pre-transposed base weight tile
    # b_ref : (1, tn)       base bias tile (f32)
    # a_ref : (D_in, rank_p) pre-transposed lora_A (rank zero-padded to 128)
    # bs_ref: (rank_p, tn)  pre-transposed lora_B with mask & alpha/rank folded
    # o_ref : (tm, tn)      output tile
    x = x_ref[...]
    base = jnp.dot(x, w_ref[...], preferred_element_type=jnp.float32)
    inter = jnp.dot(x, a_ref[...], preferred_element_type=jnp.float32)
    lora = jnp.dot(inter.astype(bs_ref.dtype), bs_ref[...],
                   preferred_element_type=jnp.float32)
    o_ref[...] = (base + b_ref[...] + lora).astype(o_ref.dtype)


def _lora_kernel_ktiled(x_ref, w_ref, b_ref, a_ref, bs_ref, o_ref,
                        acc_ref, inter_ref):
    # K-tiled variant: grid = (M, N, K) with K innermost ("arbitrary").
    k = pl.program_id(2)

    @pl.when(k == 0)
    def _():
        acc_ref[...] = jnp.zeros_like(acc_ref)
        inter_ref[...] = jnp.zeros_like(inter_ref)

    x = x_ref[...]
    acc_ref[...] += jnp.dot(x, w_ref[...], preferred_element_type=jnp.float32)
    inter_ref[...] += jnp.dot(x, a_ref[...], preferred_element_type=jnp.float32)

    @pl.when(k == pl.num_programs(2) - 1)
    def _():
        lora = jnp.dot(inter_ref[...].astype(bs_ref.dtype), bs_ref[...],
                       preferred_element_type=jnp.float32)
        o_ref[...] = (acc_ref[...] + b_ref[...] + lora).astype(o_ref.dtype)


def _merged_kernel(x_ref, w_ref, b_ref, o_ref):
    o_ref[...] = (jnp.dot(x_ref[...], w_ref[...],
                          preferred_element_type=jnp.float32)
                  + b_ref[...]).astype(o_ref.dtype)


def _merged_kernel_ktiled(x_ref, w_ref, b_ref, o_ref, acc_ref):
    k = pl.program_id(2)

    @pl.when(k == 0)
    def _():
        acc_ref[...] = jnp.zeros_like(acc_ref)

    acc_ref[...] += jnp.dot(x_ref[...], w_ref[...],
                            preferred_element_type=jnp.float32)

    @pl.when(k == pl.num_programs(2) - 1)
    def _():
        o_ref[...] = (acc_ref[...] + b_ref[...]).astype(o_ref.dtype)


# ---------------------------------------------------------------------------
# Wrapper
# ---------------------------------------------------------------------------

def masked_lora_forward(x, w_base, b_base, lora_A, lora_B, sparsity_mask,
                        alpha, rank, *,
                        compute_dtype=jnp.bfloat16, merge_lora=False,
                        tm=None, tn=None, tk=None,
                        vmem_limit_bytes=None, interpret=False):
    """x: [..., D_in] -> [..., D_out]. Dropout is identity (inference)."""
    lead = x.shape[:-1]
    D_in = x.shape[-1]
    D_out = w_base.shape[0]
    out_dtype = x.dtype
    scaling = float(alpha) / float(rank)
    M = int(math.prod(lead)) if lead else 1

    cbytes = jnp.dtype(compute_dtype).itemsize
    obytes = jnp.dtype(out_dtype).itemsize
    sub = (8 * 4) // cbytes                 # sublane packing: f32->8, bf16->16

    vmem_cap, num_tc = _device_info()
    budget = int(vmem_cap * 0.75)           # headroom for Pallas' own scratch
    if vmem_limit_bytes is None:
        vmem_limit_bytes = budget

    # ---- One-time wrapper-side weight prep (all in f32, then cast once). ----
    w_t = jnp.asarray(w_base, jnp.float32).T                      # (D_in, D_out)
    a_t = jnp.asarray(lora_A, jnp.float32).T                      # (D_in, rank)
    b_scaled = (jnp.asarray(lora_B, jnp.float32) *
                (jnp.asarray(sparsity_mask, jnp.float32) * scaling)[:, None]).T
    bias2 = jnp.asarray(b_base, jnp.float32).reshape(1, D_out)    # stays f32

    if merge_lora:
        # Classic LoRA merge (use when adapters are static across many calls).
        w_t = w_t + a_t @ b_scaled

    rank_p = _round_up(rank, LANE)           # lane-dense LoRA intermediate
    if not merge_lora:
        a_t = jnp.pad(a_t, ((0, 0), (0, rank_p - rank)))
        b_scaled = jnp.pad(b_scaled, ((0, rank_p - rank), (0, 0)))

    # ---- Tile selection (MXU-aligned, padding-aware, VMEM-bounded). ----
    if tn is None:
        if D_out <= 512:
            tn = _round_up(D_out, LANE)
        else:
            tn = min((512, 384, 256, 128),
                     key=lambda t: (_round_up(D_out, t) - D_out, -t))
    D_out_p = _round_up(D_out, tn)

    if tm is None:
        if M >= 512:
            n_row_tiles = -(-M // 512)                      # ceil(M/512)
            tm = _round_up(-(-M // n_row_tiles), sub)
        elif num_tc >= 2 and M > sub:
            tm = _round_up(-(-M // num_tc), sub)            # keep both v7x TCs busy
        else:
            tm = _round_up(max(M, 1), sub)                  # single tile on 1-TC chips
    M_p = _round_up(M, tm)

    def _footprint(tk_):
        buf = tm * tk_ * cbytes + tk_ * tn * cbytes + tn * 4 + tm * tn * obytes
        if not merge_lora:
            buf += tk_ * rank_p * cbytes + rank_p * tn * cbytes
        return 2 * buf                                       # double-buffered

    if tk is None and _footprint(D_in) > int(0.8 * budget):
        tk = 512
        for cand in (4096, 2048, 1024, 512):
            extra = (tm * tn + (0 if merge_lora else tm * rank_p)) * 4
            if _footprint(cand) + extra <= budget // 2:
                tk = cand
                break
    k_tiled = tk is not None
    if k_tiled:
        D_in_p = _round_up(D_in, tk)
        k_steps = D_in_p // tk
    else:
        D_in_p = D_in
        tk = D_in
        k_steps = 1

    # ---- Cast (once) and zero-pad to tile multiples (exact: pads are zero). ----
    x_c = x.reshape(M, D_in).astype(compute_dtype)
    w_c = w_t.astype(compute_dtype)
    bias_c = bias2
    if not merge_lora:
        a_c = a_t.astype(compute_dtype)
        bs_c = b_scaled.astype(compute_dtype)

    if M_p != M:
        x_c = jnp.pad(x_c, ((0, M_p - M), (0, 0)))
    if D_in_p != D_in:
        pk = D_in_p - D_in
        x_c = jnp.pad(x_c, ((0, 0), (0, pk)))
        w_c = jnp.pad(w_c, ((0, pk), (0, 0)))
        if not merge_lora:
            a_c = jnp.pad(a_c, ((0, pk), (0, 0)))
    if D_out_p != D_out:
        pn = D_out_p - D_out
        w_c = jnp.pad(w_c, ((0, 0), (0, pn)))
        bias_c = jnp.pad(bias_c, ((0, 0), (0, pn)))
        if not merge_lora:
            bs_c = jnp.pad(bs_c, ((0, 0), (0, pn)))

    # ---- Advisory cost estimate for the XLA scheduler. ----
    flops = 2 * M_p * D_in_p * D_out_p
    bytes_accessed = (x_c.size * cbytes + (M_p // tm) * w_c.size * cbytes
                      + M_p * D_out_p * obytes + D_out_p * 4)
    if not merge_lora:
        flops += 2 * M_p * D_in_p * rank_p * (D_out_p // tn)
        flops += 2 * M_p * rank_p * D_out_p
        bytes_accessed += (a_c.size + bs_c.size) * cbytes * (M_p // tm)
    cost = pl.CostEstimate(flops=int(flops), transcendentals=0,
                           bytes_accessed=int(bytes_accessed))

    # ---- Grid / specs. ----
    if not k_tiled:
        grid = (M_p // tm, D_out_p // tn)
        dims = ("parallel", "parallel")
        x_spec = pl.BlockSpec((tm, D_in_p), lambda i, j: (i, 0))
        w_spec = pl.BlockSpec((D_in_p, tn), lambda i, j: (0, j))
        b_spec = pl.BlockSpec((1, tn), lambda i, j: (0, j))
        o_spec = pl.BlockSpec((tm, tn), lambda i, j: (i, j))
        if merge_lora:
            kernel = _merged_kernel
            in_specs = [x_spec, w_spec, b_spec]
            args = (x_c, w_c, bias_c)
            scratch = []
        else:
            kernel = _lora_kernel
            in_specs = [x_spec, w_spec, b_spec,
                        pl.BlockSpec((D_in_p, rank_p), lambda i, j: (0, 0)),
                        pl.BlockSpec((rank_p, tn), lambda i, j: (0, j))]
            args = (x_c, w_c, bias_c, a_c, bs_c)
            scratch = []
    else:
        grid = (M_p // tm, D_out_p // tn, k_steps)
        dims = ("parallel", "parallel", "arbitrary")
        x_spec = pl.BlockSpec((tm, tk), lambda i, j, k: (i, k))
        w_spec = pl.BlockSpec((tk, tn), lambda i, j, k: (k, j))
        b_spec = pl.BlockSpec((1, tn), lambda i, j, k: (0, j))
        o_spec = pl.BlockSpec((tm, tn), lambda i, j, k: (i, j))
        if merge_lora:
            kernel = _merged_kernel_ktiled
            in_specs = [x_spec, w_spec, b_spec]
            args = (x_c, w_c, bias_c)
            scratch = [pltpu.VMEM((tm, tn), jnp.float32)]
        else:
            kernel = _lora_kernel_ktiled
            in_specs = [x_spec, w_spec, b_spec,
                        pl.BlockSpec((tk, rank_p), lambda i, j, k: (k, 0)),
                        pl.BlockSpec((rank_p, tn), lambda i, j, k: (0, j))]
            args = (x_c, w_c, bias_c, a_c, bs_c)
            scratch = [pltpu.VMEM((tm, tn), jnp.float32),
                       pltpu.VMEM((tm, rank_p), jnp.float32)]

    out_flat = pl.pallas_call(
        kernel,
        out_shape=jax.ShapeDtypeStruct((M_p, D_out_p), out_dtype),
        grid_spec=pltpu.PrefetchScalarGridSpec(
            num_scalar_prefetch=0,
            grid=grid,
            in_specs=in_specs,
            out_specs=o_spec,
            scratch_shapes=scratch),
        compiler_params=pltpu.CompilerParams(
            dimension_semantics=dims,
            vmem_limit_bytes=int(vmem_limit_bytes)),
        cost_estimate=cost,
        interpret=interpret,
    )(*args)

    return out_flat[:M, :D_out].reshape(*lead, D_out)


# ---------------------------------------------------------------------------
# Reference & test
# ---------------------------------------------------------------------------

def _reference(x, w_base, b_base, lora_A, lora_B, sparsity_mask, alpha, rank):
    scaling = alpha / rank
    base = jnp.einsum('...d,od->...o', x, w_base) + b_base
    inter = jnp.einsum('...d,rd->...r', x, lora_A)
    lora = jnp.einsum('...r,or->...o', inter, lora_B)
    return base + lora * sparsity_mask * scaling


if __name__ == "__main__":
    # --- Small shapes consistent with the module's nn.Linear base layer. ---
    B, S = 2, 8
    D_in, D_out = 32, 32
    rank, alpha = 4, 8.0

    key = jax.random.PRNGKey(0)
    k_x, k_w, k_b, k_a, k_bb = jax.random.split(key, 5)

    x = jax.random.normal(k_x, (B, S, D_in), dtype=jnp.float32)
    bound = 1.0 / math.sqrt(D_in)
    w_base = jax.random.uniform(k_w, (D_out, D_in), jnp.float32,
                                minval=-bound, maxval=bound)
    b_base = jax.random.uniform(k_b, (D_out,), jnp.float32,
                                minval=-bound, maxval=bound)
    # lora_B nonzero here so the masked LoRA path is numerically exercised
    # (reset_parameters zeros it, but training makes it nonzero).
    lora_A = jax.random.uniform(k_a, (rank, D_in), jnp.float32,
                                minval=-bound, maxval=bound)
    lora_B = 0.05 * jax.random.normal(k_bb, (D_out, rank), dtype=jnp.float32)
    sparsity_mask = (jnp.arange(D_out) % 3 != 0).astype(jnp.float32)

    ref = _reference(x, w_base, b_base, lora_A, lora_B, sparsity_mask, alpha, rank)

    # 1) f32 operand path (exactness check).
    out_f32 = jax.block_until_ready(
        masked_lora_forward(x, w_base, b_base, lora_A, lora_B, sparsity_mask,
                            alpha, rank, compute_dtype=jnp.float32))
    assert out_f32.shape == (B, S, D_out)
    assert jnp.allclose(out_f32, ref, atol=1e-4, rtol=1e-4)

    # 2) Default bf16 operand path (f32 accumulation).
    out_bf16 = jax.block_until_ready(
        masked_lora_forward(x, w_base, b_base, lora_A, lora_B, sparsity_mask,
                            alpha, rank))
    assert jnp.allclose(out_bf16, ref, atol=5e-2, rtol=5e-2)

    # 3) Merged-weight path (static adapters), f32 for a tight check.
    out_merged = jax.block_until_ready(
        masked_lora_forward(x, w_base, b_base, lora_A, lora_B, sparsity_mask,
                            alpha, rank, compute_dtype=jnp.float32,
                            merge_lora=True))
    assert jnp.allclose(out_merged, ref, atol=1e-4, rtol=1e-4)

    # 4) K-tiled (D_in grid axis) path, forced at a small size to exercise it.
    B2, S2, D_in2, D_out2, rank2 = 2, 16, 512, 384, 8
    k2 = jax.random.split(jax.random.PRNGKey(1), 5)
    bound2 = 1.0 / math.sqrt(D_in2)
    x2 = jax.random.normal(k2[0], (B2, S2, D_in2), dtype=jnp.float32)
    w2 = jax.random.uniform(k2[1], (D_out2, D_in2), jnp.float32,
                            minval=-bound2, maxval=bound2)
    b2 = jax.random.uniform(k2[2], (D_out2,), jnp.float32,
                            minval=-bound2, maxval=bound2)
    A2 = jax.random.uniform(k2[3], (rank2, D_in2), jnp.float32,
                            minval=-bound2, maxval=bound2)
    Bw2 = 0.05 * jax.random.normal(k2[4], (D_out2, rank2), dtype=jnp.float32)
    m2 = (jnp.arange(D_out2) % 2 == 0).astype(jnp.float32)

    ref2 = _reference(x2, w2, b2, A2, Bw2, m2, alpha, rank2)
    out2 = jax.block_until_ready(
        masked_lora_forward(x2, w2, b2, A2, Bw2, m2, alpha, rank2, tk=256))
    assert out2.shape == (B2, S2, D_out2)
    assert jnp.allclose(out2, ref2, atol=5e-2, rtol=5e-2)

    print("KERNEL_OK")
</pallas_src>

<mosaic_0001>
module attributes {stable_mosaic.version = 11 : i64} {
  func.func @_lora_kernel(%arg0: i32, %arg1: i32, %arg2: memref<16x32xf32, #tpu.memory_space<vmem>>, %arg3: memref<32x128xf32, #tpu.memory_space<vmem>>, %arg4: memref<1x128xf32, #tpu.memory_space<vmem>>, %arg5: memref<32x128xf32, #tpu.memory_space<vmem>>, %arg6: memref<128x128xf32, #tpu.memory_space<vmem>>, %arg7: memref<16x128xf32, #tpu.memory_space<vmem>>) attributes {dimension_semantics = [#tpu.dimension_semantics<parallel>, #tpu.dimension_semantics<parallel>], iteration_bounds = array<i64: 1, 1>, scalar_prefetch = 0 : i64, scratch_operands = 0 : i64, tpu.core_type = #tpu.core_type<tc>, window_params = [{transform_indices = @transform_0, window_bounds = array<i64: 16, 32>}, {transform_indices = @transform_1, window_bounds = array<i64: 32, 128>}, {transform_indices = @transform_2, window_bounds = array<i64: 1, 128>}, {pipeline_mode = #tpu.pipeline_mode<synchronous>, transform_indices = @transform_3, window_bounds = array<i64: 32, 128>}, {transform_indices = @transform_4, window_bounds = array<i64: 128, 128>}, {transform_indices = @transform_5, window_bounds = array<i64: 16, 128>}]} {
    %c0 = arith.constant 0 : index
    %c0_0 = arith.constant 0 : index
    %0 = vector.load %arg2[%c0, %c0_0] : memref<16x32xf32, #tpu.memory_space<vmem>>, vector<16x32xf32>
    %c0_1 = arith.constant 0 : index
    %c0_2 = arith.constant 0 : index
    %1 = vector.load %arg3[%c0_1, %c0_2] : memref<32x128xf32, #tpu.memory_space<vmem>>, vector<32x128xf32>
    %cst = arith.constant dense<0.000000e+00> : vector<16x128xf32>
    %2 = tpu.matmul %0, %1, %cst {dimension_numbers = #tpu.dot_dimension_numbers<[1], [0], [0], [1], [0, 0, 1, 1], [], []>} : vector<16x32xf32>, vector<32x128xf32>, vector<16x128xf32> -> vector<16x128xf32>
    %c0_3 = arith.constant 0 : index
    %c0_4 = arith.constant 0 : index
    %3 = vector.load %arg5[%c0_3, %c0_4] : memref<32x128xf32, #tpu.memory_space<vmem>>, vector<32x128xf32>
    %cst_5 = arith.constant dense<0.000000e+00> : vector<16x128xf32>
    %4 = tpu.matmul %0, %3, %cst_5 {dimension_numbers = #tpu.dot_dimension_numbers<[1], [0], [0], [1], [0, 0, 1, 1], [], []>} : vector<16x32xf32>, vector<32x128xf32>, vector<16x128xf32> -> vector<16x128xf32>
    %c0_6 = arith.constant 0 : index
    %c0_7 = arith.constant 0 : index
    %5 = vector.load %arg6[%c0_6, %c0_7] : memref<128x128xf32, #tpu.memory_space<vmem>>, vector<128x128xf32>
    %cst_8 = arith.constant dense<0.000000e+00> : vector<16x128xf32>
    %6 = tpu.matmul %4, %5, %cst_8 {dimension_numbers = #tpu.dot_dimension_numbers<[1], [0], [0], [1], [0, 0, 1, 1], [], []>} : vector<16x128xf32>, vector<128x128xf32>, vector<16x128xf32> -> vector<16x128xf32>
    %c0_9 = arith.constant 0 : index
    %c0_10 = arith.constant 0 : index
    %7 = vector.load %arg4[%c0_9, %c0_10] : memref<1x128xf32, #tpu.memory_space<vmem>>, vector<1x128xf32>
    %8 = vector.broadcast %7 : vector<1x128xf32> to vector<16x128xf32>
    %9 = arith.addf %2, %8 : vector<16x128xf32>
    %10 = arith.addf %9, %6 : vector<16x128xf32>
    %c0_11 = arith.constant 0 : index
    %c0_12 = arith.constant 0 : index
    %11 = vector.load %arg7[%c0_11, %c0_12] : memref<16x128xf32, #tpu.memory_space<vmem>>, vector<16x128xf32>
    tpu.vector_store %arg7[%c0_11, %c0_12], %10 {strides = array<i32>} : memref<16x128xf32, #tpu.memory_space<vmem>>, vector<16x128xf32>,
    return
  }
  func.func @transform_0(%arg0: i32, %arg1: i32) -> (i32, i32) {
    %c0_i32 = arith.constant 0 : i32
    %c0_i32_0 = arith.constant 0 : i32
    return %arg0, %c0_i32 : i32, i32
  }
  func.func @transform_1(%arg0: i32, %arg1: i32) -> (i32, i32) {
    %c0_i32 = arith.constant 0 : i32
    %c0_i32_0 = arith.constant 0 : i32
    return %c0_i32, %arg1 : i32, i32
  }
  func.func @transform_2(%arg0: i32, %arg1: i32) -> (i32, i32) {
    %c0_i32 = arith.constant 0 : i32
    %c0_i32_0 = arith.constant 0 : i32
    return %c0_i32, %arg1 : i32, i32
  }
  func.func @transform_3(%arg0: i32, %arg1: i32) -> (i32, i32) {
    %c0_i32 = arith.constant 0 : i32
    %c0_i32_0 = arith.constant 0 : i32
    %c0_i32_1 = arith.constant 0 : i32
    return %c0_i32, %c0_i32_0 : i32, i32
  }
  func.func @transform_4(%arg0: i32, %arg1: i32) -> (i32, i32) {
    %c0_i32 = arith.constant 0 : i32
    %c0_i32_0 = arith.constant 0 : i32
    return %c0_i32, %arg1 : i32, i32
  }
  func.func @transform_5(%arg0: i32, %arg1: i32) -> (i32, i32) {
    %c0_i32 = arith.constant 0 : i32
    return %arg0, %arg1 : i32, i32
  }
}

</mosaic_0001>

<llo_original>
// kernel: tpu_custom_call.1
$region0: #{tpu_custom_call.1}
  #allocation0 [shape = 'u32[]', space=smem, size = 0x4, offset = 0x4, fixed_abs, tag = 'smem constant byte address 0x4 - core index']
  #allocation1 [shape = 'u32[144,128]{1,0:T(1,128)}', space=vmem, size = 0x12000, scoped, tag = 'internal scratch']
  %s0 = inlined_call_operand.hbm [shape: f32[16,32], index: 0, kind: input, shape index: {}]
  %s1 = inlined_call_operand.hbm [shape: f32[32,128], index: 1, kind: input, shape index: {}]
  %s2 = inlined_call_operand.vmem [shape: f32[1,128], index: 2, kind: input, shape index: {}]
  %s3 = inlined_call_operand.hbm [shape: f32[32,128], index: 3, kind: input, shape index: {}]
  %s4 = inlined_call_operand.hbm [shape: f32[128,128], index: 4, kind: input, shape index: {}]
  %s5 = inlined_call_operand.hbm [shape: f32[16,128], index: 5, kind: output, shape index: {}]
  %s6 = sld [smem:[#allocation0]]
  $region46: #{tpu_custom_call.1} parent=0
    _
  %s8 = ssub.s32 1, %s6
  %s9 = scalar_select 0, %s8, %s6
  $region1: #{tpu_custom_call.1} parent=0
    #allocation2 [shape = 'u8[8192]{0}', space=vmem, size = 0x2000, scoped, tag = 'input window, operand 0, single buffered']
    #allocation3 [shape = 's32[1]{0}', space=sflag, size = 0x4, scoped, tag = 'scoped memory for tpu_custom_call.1']
    #allocation4 [shape = 's32[1]{0}', space=sflag, size = 0x4, scoped, tag = 'scoped memory for tpu_custom_call.1']
    #allocation5 [shape = 'u8[16384]{0}', space=vmem, size = 0x4000, scoped, tag = 'input window, operand 1, single buffered']
    #allocation6 [shape = 's32[1]{0}', space=sflag, size = 0x4, scoped, tag = 'scoped memory for tpu_custom_call.1']
    #allocation7 [shape = 'u8[16384]{0}', space=vmem, size = 0x4000, scoped, tag = 'input window, operand 3, single buffered']
    #allocation8 [shape = 'u8[65536]{0}', space=vmem, size = 0x10000, scoped, tag = 'input window, operand 4, single buffered']
    #allocation9 [shape = 's32[1]{0}', space=sflag, size = 0x4, scoped, tag = 'scoped memory for tpu_custom_call.1']
    #allocation10 [shape = 'u8[8192]{0}', space=vmem, size = 0x2000, scoped, tag = 'output window, operand 0, single buffered']
    %10 = vsyncpa [#allocation3], 0
    %11 = vsyncpa [#allocation6], 0
    %12 = vsyncpa [#allocation9], 0
    %13 = vsyncpa [#allocation4], 0
    // Predicated region
    $region2: #{tpu_custom_call.1} parent=1 // pred_check
      _
    $region3: #{tpu_custom_call.1} parent=1 // pred_check_branch
      %15 = sbr.rel (0) target = $region5
    $region4: #{tpu_custom_call.1} parent=1 // pred_region
      %s17 = ssub.s32 256, 256
      %18 = vsyncadd [#allocation3], %s17
      %s19 = sshll.u32 [#allocation2], 4
      %s20 = int_to_ptr.vmem [resolvable:$true] %s19
      %25 = dma.hbm_to_vmem [thread:$0]  %s0, 256, %s20, [#allocation3], 128, 128, 8
    $region5: #{tpu_custom_call.1} parent=1 // pred_fallthru
      _
    // Predicated region
    $region6: #{tpu_custom_call.1} parent=1 // pred_check
      _
    $region7: #{tpu_custom_call.1} parent=1 // pred_check_branch
      %27 = sbr.rel (0) target = $region9
    $region8: #{tpu_custom_call.1} parent=1 // pred_region
      %s29 = ssub.s32 512, 512
      %30 = vsyncadd [#allocation6], %s29
      %s31 = sshll.u32 [#allocation5], 4
      %s32 = int_to_ptr.vmem [resolvable:$true] %s31
      %37 = dma.hbm_to_vmem [thread:$0]  %s1, 512, %s32, [#allocation6], 128, 128, 8
    $region9: #{tpu_custom_call.1} parent=1 // pred_fallthru
      _
    // Predicated region
    $region10: #{tpu_custom_call.1} parent=1 // pred_check
      _
    $region11: #{tpu_custom_call.1} parent=1 // pred_check_branch
      %39 = sbr.rel (0) target = $region13
    $region12: #{tpu_custom_call.1} parent=1 // pred_region
      _
    $region13: #{tpu_custom_call.1} parent=1 // pred_fallthru
      _
    // Predicated region
    $region14: #{tpu_custom_call.1} parent=1 // pred_check
      _
    $region15: #{tpu_custom_call.1} parent=1 // pred_check_branch
      %41 = sbr.rel (0) target = $region17
    $region16: #{tpu_custom_call.1} parent=1 // pred_region
      %s43 = ssub.s32 512, 512
      %44 = vsyncadd [#allocation6], %s43
      %s45 = sshll.u32 [#allocation7], 4
      %s46 = int_to_ptr.vmem [resolvable:$true] %s45
      %51 = dma.hbm_to_vmem [thread:$0]  %s3, 512, %s46, [#allocation6], 128, 128, 8
    $region17: #{tpu_custom_call.1} parent=1 // pred_fallthru
      _
    // Predicated region
    $region18: #{tpu_custom_call.1} parent=1 // pred_check
      _
    $region19: #{tpu_custom_call.1} parent=1 // pred_check_branch
      %53 = sbr.rel (0) target = $region21
    $region20: #{tpu_custom_call.1} parent=1 // pred_region
      %s55 = ssub.s32 2048, 2048
      %56 = vsyncadd [#allocation9], %s55
      %s57 = sshll.u32 [#allocation8], 4
      %s58 = int_to_ptr.vmem [resolvable:$true] %s57
      %63 = dma.hbm_to_vmem [thread:$0]  %s4, 2048, %s58, [#allocation9], 128, 128, 8
    $region21: #{tpu_custom_call.1} parent=1 // pred_fallthru
      _
    // Predicated region
    $region22: #{tpu_custom_call.1} parent=1 // pred_check
      _
    $region23: #{tpu_custom_call.1} parent=1 // pred_check_branch
      %65 = sbr.rel (0) target = $region25
    $region24: #{tpu_custom_call.1} parent=1 // pred_region
      %66 = dma.done [#allocation3], 256
    $region25: #{tpu_custom_call.1} parent=1 // pred_fallthru
      _
    // Predicated region
    $region26: #{tpu_custom_call.1} parent=1 // pred_check
      _
    $region27: #{tpu_custom_call.1} parent=1 // pred_check_branch
      %68 = sbr.rel (0) target = $region29
    $region28: #{tpu_custom_call.1} parent=1 // pred_region
      %69 = dma.done [#allocation6], 512
    $region29: #{tpu_custom_call.1} parent=1 // pred_fallthru
      _
    // Predicated region
    $region30: #{tpu_custom_call.1} parent=1 // pred_check
      _
    $region31: #{tpu_custom_call.1} parent=1 // pred_check_branch
      %71 = sbr.rel (0) target = $region33
    $region32: #{tpu_custom_call.1} parent=1 // pred_region
      %72 = dma.done [#allocation6], 512
    $region33: #{tpu_custom_call.1} parent=1 // pred_fallthru
      _
    // Predicated region
    $region34: #{tpu_custom_call.1} parent=1 // pred_check
      _
    $region35: #{tpu_custom_call.1} parent=1 // pred_check_branch
      %74 = sbr.rel (0) target = $region37
    $region36: #{tpu_custom_call.1} parent=1 // pred_region
      %75 = dma.done [#allocation9], 2048
    $region37: #{tpu_custom_call.1} parent=1 // pred_fallthru
      _
    %v76 = vld [vmem:[#allocation2] sm:$0xff]
    %v77 = vld [vmem:[#allocation2 + $0x8] sm:$0xff]
    %v78 = vld [vmem:[#allocation5] sm:$0xff]
    %v79 = vld [vmem:[#allocation5 + $0x8] sm:$0xff]
    %v80 = vld [vmem:[#allocation5 + $0x10] sm:$0xff]
    %v81 = vld [vmem:[#allocation5 + $0x18] sm:$0xff]
    %v82 = vld [vmem:[#allocation7] sm:$0xff]
    %v83 = vld [vmem:[#allocation7 + $0x8] sm:$0xff]
    %v84 = vld [vmem:[#allocation7 + $0x10] sm:$0xff]
    %v85 = vld [vmem:[#allocation7 + $0x18] sm:$0xff]
    %vm86 = vcmask 261120
    %v88 = vsel %vm86, %v76, 0
    %v91 = vsel %vm86, %v77, 0
    %93 = vmatprep.subr.mxu0 0.0
    %94 = vmatpush1.msra.mxu0 0.0
    %95 = vmatprep.subr.mxu0 0.0
    %96 = vmatpush1.msra.mxu0 0.0
    %97 = vmatprep.subr.mxu0 0.0
    %98 = vmatpush1.msra.mxu0 0.0
    %99 = vmatprep.subr.mxu0 0.0
    %100 = vmatpush1.msra.mxu0 0.0
    %101 = vmatprep.subr.mxu0 0.0
    %102 = vmatpush1.msra.mxu0 0.0
    %103 = vmatprep.subr.mxu0 0.0
    %104 = vmatpush1.msra.mxu0 0.0
    %105 = vmatprep.subr.mxu0 0.0
    %106 = vmatpush1.msra.mxu0 0.0
    %107 = vmatprep.subr.mxu0 0.0
    %108 = vmatpush1.msra.mxu0 0.0
    %109 = vmatprep.subr.mxu0 0.0
    %110 = vmatpush1.msra.mxu0 0.0
    %111 = vmatprep.subr.mxu0 0.0
    %112 = vmatpush1.msra.mxu0 0.0
    %113 = vmatprep.subr.mxu0 0.0
    %114 = vmatpush1.msra.mxu0 0.0
    %115 = vmatprep.subr.mxu0 0.0
    %116 = vmatpush1.msra.mxu0 0.0
    %117 = vmatprep.subr.mxu0 0.0
    %118 = vmatpush1.msra.mxu0 %v85
    %119 = vmatprep.subr.mxu0 0.0
    %120 = vmatpush1.msra.mxu0 %v84
    %121 = vmatprep.subr.mxu0 0.0
    %122 = vmatpush1.msra.mxu0 %v83
    %123 = vmatprep.subr.mxu0 0.0
    %124 = vmatpush1.msra.mxu0 %v82
    %125 = vmatprep.subr.mxu0 0.0
    %126 = vmatpush2.msra.mxu0 0.0
    %127 = vmatprep.subr.mxu0 0.0
    %128 = vmatpush2.msra.mxu0 0.0
    %129 = vmatprep.subr.mxu0 0.0
    %130 = vmatpush2.msra.mxu0 0.0
    %131 = vmatprep.subr.mxu0 0.0
    %132 = vmatpush2.msra.mxu0 0.0
    %133 = vmatprep.subr.mxu0 0.0
    %134 = vmatpush2.msra.mxu0 0.0
    %135 = vmatprep.subr.mxu0 0.0
    %136 = vmatpush2.msra.mxu0 0.0
    %137 = vmatprep.subr.mxu0 0.0
    %138 = vmatpush2.msra.mxu0 0.0
    %139 = vmatprep.subr.mxu0 0.0
    %140 = vmatpush2.msra.mxu0 0.0
    %141 = vmatprep.subr.mxu0 0.0
    %142 = vmatpush2.msra.mxu0 0.0
    %143 = vmatprep.subr.mxu0 0.0
    %144 = vmatpush2.msra.mxu0 0.0
    %145 = vmatprep.subr.mxu0 0.0
    %146 = vmatpush2.msra.mxu0 0.0
    %147 = vmatprep.subr.mxu0 0.0
    %148 = vmatpush2.msra.mxu0 0.0
    %149 = vmatprep.subr.mxu0 0.0
    %150 = vmatpush2.msra.mxu0 0.0
    %151 = vmatprep.subr.mxu0 0.0
    %152 = vmatpush2.msra.mxu0 0.0
    %153 = vmatprep.subr.mxu0 0.0
    %154 = vmatpush2.msra.mxu0 0.0
    %155 = vmatprep.subr.mxu0 0.0
    %156 = vmatpush2.msra.mxu0 0.0
    %157 = vmatprep.mubr.f32.mxu0 0.0
    %158 = vmatmul.mubr.f32.gmra.mxu0 %v88
    %v159 = vpop.f32.mrf.mxu0
    %v160 = vadd.f32 0.0, %v159
    %v161 = vpop.f32.mrf.mxu0
    %162 = vmatprep.mubr.f32.mxu0 0.0
    %163 = vmatmul.mubr.f32.gmra.mxu0 %v91
    %v164 = vpop.f32.mrf.mxu0
    %v165 = vadd.f32 0.0, %v164
    %v166 = vpop.f32.mrf.mxu0
    %167 = vdwg.mxu0
    %v168 = vld [vmem:[#allocation8] sm:$0xff]
    %v169 = vld [vmem:[#allocation8 + $0x8] sm:$0xff]
    %v170 = vld [vmem:[#allocation8 + $0x10] sm:$0xff]
    %v171 = vld [vmem:[#allocation8 + $0x18] sm:$0xff]
    %v172 = vld [vmem:[#allocation8 + $0x20] sm:$0xff]
    %v173 = vld [vmem:[#allocation8 + $0x28] sm:$0xff]
    %v174 = vld [vmem:[#allocation8 + $0x30] sm:$0xff]
    %v175 = vld [vmem:[#allocation8 + $0x38] sm:$0xff]
    %v176 = vld [vmem:[#allocation8 + $0x40] sm:$0xff]
    %v177 = vld [vmem:[#allocation8 + $0x48] sm:$0xff]
    %v178 = vld [vmem:[#allocation8 + $0x50] sm:$0xff]
    %v179 = vld [vmem:[#allocation8 + $0x58] sm:$0xff]
    %v180 = vld [vmem:[#allocation8 + $0x60] sm:$0xff]
    %v181 = vld [vmem:[#allocation8 + $0x68] sm:$0xff]
    %v182 = vld [vmem:[#allocation8 + $0x70] sm:$0xff]
    %v183 = vld [vmem:[#allocation8 + $0x78] sm:$0xff]
    %184 = vmatprep.subr.mxu0 0.0
    %185 = vmatpush1.msra.mxu0 %v183
    %186 = vmatprep.subr.mxu0 0.0
    %187 = vmatpush1.msra.mxu0 %v182
    %188 = vmatprep.subr.mxu0 0.0
    %189 = vmatpush1.msra.mxu0 %v181
    %190 = vmatprep.subr.mxu0 0.0
    %191 = vmatpush1.msra.mxu0 %v180
    %192 = vmatprep.subr.mxu0 0.0
    %193 = vmatpush1.msra.mxu0 %v179
    %194 = vmatprep.subr.mxu0 0.0
    %195 = vmatpush1.msra.mxu0 %v178
    %196 = vmatprep.subr.mxu0 0.0
    %197 = vmatpush1.msra.mxu0 %v177
    %198 = vmatprep.subr.mxu0 0.0
    %199 = vmatpush1.msra.mxu0 %v176
    %200 = vmatprep.subr.mxu0 0.0
    %201 = vmatpush1.msra.mxu0 %v175
    %202 = vmatprep.subr.mxu0 0.0
    %203 = vmatpush1.msra.mxu0 %v174
    %204 = vmatprep.subr.mxu0 0.0
    %205 = vmatpush1.msra.mxu0 %v173
    %206 = vmatprep.subr.mxu0 0.0
    %207 = vmatpush1.msra.mxu0 %v172
    %208 = vmatprep.subr.mxu0 0.0
    %209 = vmatpush1.msra.mxu0 %v171
    %210 = vmatprep.subr.mxu0 0.0
    %211 = vmatpush1.msra.mxu0 %v170
    %212 = vmatprep.subr.mxu0 0.0
    %213 = vmatpush1.msra.mxu0 %v169
    %214 = vmatprep.subr.mxu0 0.0
    %215 = vmatpush1.msra.mxu0 %v168
    %216 = vmatprep.subr.mxu0 0.0
    %217 = vmatpush2.msra.mxu0 0.0
    %218 = vmatprep.subr.mxu0 0.0
    %219 = vmatpush2.msra.mxu0 0.0
    %220 = vmatprep.subr.mxu0 0.0
    %221 = vmatpush2.msra.mxu0 0.0
    %222 = vmatprep.subr.mxu0 0.0
    %223 = vmatpush2.msra.mxu0 0.0
    %224 = vmatprep.subr.mxu0 0.0
    %225 = vmatpush2.msra.mxu0 0.0
    %226 = vmatprep.subr.mxu0 0.0
    %227 = vmatpush2.msra.mxu0 0.0
    %228 = vmatprep.subr.mxu0 0.0
    %229 = vmatpush2.msra.mxu0 0.0
    %230 = vmatprep.subr.mxu0 0.0
    %231 = vmatpush2.msra.mxu0 0.0
    %232 = vmatprep.subr.mxu0 0.0
    %233 = vmatpush2.msra.mxu0 0.0
    %234 = vmatprep.subr.mxu0 0.0
    %235 = vmatpush2.msra.mxu0 0.0
    %236 = vmatprep.subr.mxu0 0.0
    %237 = vmatpush2.msra.mxu0 0.0
    %238 = vmatprep.subr.mxu0 0.0
    %239 = vmatpush2.msra.mxu0 0.0
    %240 = vmatprep.subr.mxu0 0.0
    %241 = vmatpush2.msra.mxu0 0.0
    %242 = vmatprep.subr.mxu0 0.0
    %243 = vmatpush2.msra.mxu0 0.0
    %244 = vmatprep.subr.mxu0 0.0
    %245 = vmatpush2.msra.mxu0 0.0
    %246 = vmatprep.subr.mxu0 0.0
    %247 = vmatpush2.msra.mxu0 0.0
    %248 = vmatprep.mubr.f32.mxu0 0.0
    %249 = vmatmul.mubr.f32.gmra.mxu0 %v160
    %v250 = vpop.f32.mrf.mxu0
    %v251 = vadd.f32 0.0, %v250
    %v252 = vpop.f32.mrf.mxu0
    %253 = vmatprep.mubr.f32.mxu0 0.0
    %254 = vmatmul.mubr.f32.gmra.mxu0 %v165
    %v255 = vpop.f32.mrf.mxu0
    %v256 = vadd.f32 0.0, %v255
    %v257 = vpop.f32.mrf.mxu0
    %258 = vdwg.mxu0
    %v259 = vld [vmem:[%s2] sm:$0x1]
    %v261 = vlaneseq
    %v262 = vshrl.u32 %v261, 7
    %v263 = vsub.s32 0, %v262
    %v264 = vrot.slane %v259, %v263
    %266 = vmatprep.subr.mxu0 0.0
    %267 = vmatpush1.msra.mxu0 0.0
    %268 = vmatprep.subr.mxu0 0.0
    %269 = vmatpush1.msra.mxu0 0.0
    %270 = vmatprep.subr.mxu0 0.0
    %271 = vmatpush1.msra.mxu0 0.0
    %272 = vmatprep.subr.mxu0 0.0
    %273 = vmatpush1.msra.mxu0 0.0
    %274 = vmatprep.subr.mxu0 0.0
    %275 = vmatpush1.msra.mxu0 0.0
    %276 = vmatprep.subr.mxu0 0.0
    %277 = vmatpush1.msra.mxu0 0.0
    %278 = vmatprep.subr.mxu0 0.0
    %279 = vmatpush1.msra.mxu0 0.0
    %280 = vmatprep.subr.mxu0 0.0
    %281 = vmatpush1.msra.mxu0 0.0
    %282 = vmatprep.subr.mxu0 0.0
    %283 = vmatpush1.msra.mxu0 0.0
    %284 = vmatprep.subr.mxu0 0.0
    %285 = vmatpush1.msra.mxu0 0.0
    %286 = vmatprep.subr.mxu0 0.0
    %287 = vmatpush1.msra.mxu0 0.0
    %288 = vmatprep.subr.mxu0 0.0
    %289 = vmatpush1.msra.mxu0 0.0
    %290 = vmatprep.subr.mxu0 0.0
    %291 = vmatpush1.msra.mxu0 %v81
    %292 = vmatprep.subr.mxu0 0.0
    %293 = vmatpush1.msra.mxu0 %v80
    %294 = vmatprep.subr.mxu0 0.0
    %295 = vmatpush1.msra.mxu0 %v79
    %296 = vmatprep.subr.mxu0 0.0
    %297 = vmatpush1.msra.mxu0 %v78
    %298 = vmatprep.subr.mxu0 0.0
    %299 = vmatpush2.msra.mxu0 0.0
    %300 = vmatprep.subr.mxu0 0.0
    %301 = vmatpush2.msra.mxu0 0.0
    %302 = vmatprep.subr.mxu0 0.0
    %303 = vmatpush2.msra.mxu0 0.0
    %304 = vmatprep.subr.mxu0 0.0
    %305 = vmatpush2.msra.mxu0 0.0
    %306 = vmatprep.subr.mxu0 0.0
    %307 = vmatpush2.msra.mxu0 0.0
    %308 = vmatprep.subr.mxu0 0.0
    %309 = vmatpush2.msra.mxu0 0.0
    %310 = vmatprep.subr.mxu0 0.0
    %311 = vmatpush2.msra.mxu0 0.0
    %312 = vmatprep.subr.mxu0 0.0
    %313 = vmatpush2.msra.mxu0 0.0
    %314 = vmatprep.subr.mxu0 0.0
    %315 = vmatpush2.msra.mxu0 0.0
    %316 = vmatprep.subr.mxu0 0.0
    %317 = vmatpush2.msra.mxu0 0.0
    %318 = vmatprep.subr.mxu0 0.0
    %319 = vmatpush2.msra.mxu0 0.0
    %320 = vmatprep.subr.mxu0 0.0
    %321 = vmatpush2.msra.mxu0 0.0
    %322 = vmatprep.subr.mxu0 0.0
    %323 = vmatpush2.msra.mxu0 0.0
    %324 = vmatprep.subr.mxu0 0.0
    %325 = vmatpush2.msra.mxu0 0.0
    %326 = vmatprep.subr.mxu0 0.0
    %327 = vmatpush2.msra.mxu0 0.0
    %328 = vmatprep.subr.mxu0 0.0
    %329 = vmatpush2.msra.mxu0 0.0
    %330 = vmatprep.mubr.f32.mxu0 0.0
    %331 = vmatmul.mubr.f32.gmra.mxu0 %v88
    %v332 = vpop.f32.mrf.mxu0
    %v333 = vadd.f32 %v264, %v332
    %v334 = vpop.f32.mrf.mxu0
    %335 = vmatprep.mubr.f32.mxu0 0.0
    %336 = vmatmul.mubr.f32.gmra.mxu0 %v91
    %v337 = vpop.f32.mrf.mxu0
    %v338 = vadd.f32 %v264, %v337
    %v339 = vpop.f32.mrf.mxu0
    %340 = vdwg.mxu0
    %v341 = vadd.f32 %v333, %v251
    %v342 = vadd.f32 %v338, %v256
    %343 = vst [vmem:[#allocation10] sm:$0xff] %v341
    %344 = vst [vmem:[#allocation10 + $0x8] sm:$0xff] %v342
    // Predicated region
    $region38: #{tpu_custom_call.1} parent=1 // pred_check
      _
    $region39: #{tpu_custom_call.1} parent=1 // pred_check_branch
      %346 = sbr.rel (0) target = $region41
    $region40: #{tpu_custom_call.1} parent=1 // pred_region
      %s348 = ssub.s32 256, 256
      %349 = vsyncadd [#allocation4], %s348
      %s350 = sshll.u32 [#allocation10], 4
      %s351 = int_to_ptr.vmem [resolvable:$true] %s350
      %356 = dma.vmem_to_hbm [thread:$0]  %s351, 256, %s5, [#allocation4], 128, 128, 8
    $region41: #{tpu_custom_call.1} parent=1 // pred_fallthru
      _
    // Predicated region
    $region42: #{tpu_custom_call.1} parent=1 // pred_check
      _
    $region43: #{tpu_custom_call.1} parent=1 // pred_check_branch
      %358 = sbr.rel (0) target = $region45
    $region44: #{tpu_custom_call.1} parent=1 // pred_region
      %359 = dma.done [#allocation4], 256
    $region45: #{tpu_custom_call.1} parent=1 // pred_fallthru
      _
    %360 = vsyncpa [#allocation3], 1
    %361 = vsyncpa [#allocation6], 1
    %362 = vsyncpa [#allocation9], 1
    %363 = vsyncpa [#allocation4], 1

</llo_original>
